<compile_context>
chip_gen: v6e
topology: v6e:2x2x1
jax: 0.10.0
libtpu: 0.0.40
codegen_flags: <defaults>
</compile_context>

<pallas_src>
import jax
import jax.numpy as jnp
from jax.experimental import pallas as pl
from jax.experimental.pallas import tpu as pltpu


# ------------------------- Pallas kernel (hot path) -------------------------
def _backbone_kernel(img_ref, txt_ref, seg_ref,
                     w_img_ref, b_img_ref,
                     wg_img_ref, wg_txt_ref, b_gate_ref,
                     w_out_ref, b_out_ref,
                     out_ref):
    """One grid step == tb batch elements (tb*N flattened image rows).

    img_ref : (tb*N, d_img)  input dtype (f32/bf16) image rows for this tile
    txt_ref : (tb, C)        f32   pre-projected text features
    seg_ref : (tb, tb*N)     bf16  constant segment-mean matrix (1/N entries)
    out_ref : (tb, d_out)    f32
    """
    # ---- image branch: per-image projection + ReLU ----
    imgs = img_ref[...].astype(jnp.bfloat16)                       # cast in-kernel
    proj = jnp.dot(imgs, w_img_ref[...],
                   preferred_element_type=jnp.float32)             # (tb*N, C)
    proj = jnp.maximum(proj + b_img_ref[...], 0.0)

    # ---- mean over each image set via constant segment-mean matmul ----
    img_feat = jnp.dot(seg_ref[...], proj.astype(jnp.bfloat16),
                       preferred_element_type=jnp.float32)         # (tb, C)

    # ---- text branch (tiny txt_dim projection done in the XLA wrapper) ----
    txt_feat = txt_ref[...]                                        # (tb, C) f32

    # ---- gated fusion (op='concat'): gate on [img_feat, txt_feat] ----
    # concat replaced by two matmuls against the two halves of w_gate.
    # TODO(synk): concat order [img_feat, txt_feat] assumed (source not given).
    gate_pre = (jnp.dot(img_feat.astype(jnp.bfloat16), wg_img_ref[...],
                        preferred_element_type=jnp.float32)
                + jnp.dot(txt_feat.astype(jnp.bfloat16), wg_txt_ref[...],
                          preferred_element_type=jnp.float32)
                + b_gate_ref[...])
    gate = jax.nn.sigmoid(gate_pre)                                # (tb, C)
    fused = gate * img_feat + (1.0 - gate) * txt_feat              # (tb, C)

    # ---- output projection ----
    out = jnp.dot(fused.astype(jnp.bfloat16), w_out_ref[...],
                  preferred_element_type=jnp.float32) + b_out_ref[...]
    out_ref[...] = out.astype(out_ref.dtype)                       # (tb, d_out)


# --------------------------- tiling / VMEM sizing ----------------------------
def _vmem_budget_bytes():
    """~3/4 of physical VMEM (48 MiB on v7x, 96 MiB on v5e/v6e)."""
    cap = 64 * 1024 * 1024
    try:
        cap = int(pltpu.get_tpu_info().vmem_capacity_bytes)
    except Exception:  # query unavailable -> conservative default
        pass
    return (cap * 3) // 4


def _tb_target(n, d_img, img_itemsize, vmem_budget):
    """Batch-tile target: double-buffered image block ~60% of the VMEM budget."""
    per_row = 2 * n * d_img * img_itemsize        # double-buffered bytes / batch row
    t = int(0.6 * vmem_budget) // max(per_row, 1)
    return int(max(8, min(128, (t // 8) * 8)))


def _choose_tb(batch, target):
    """Largest multiple-of-8 divisor of `batch` that is <= target (and <= batch//2
    when batch >= 16, so the parallel grid keeps both v7x TensorCores busy);
    otherwise fall back to one full-array block (no batch padding / HBM copies)."""
    cap = min(target, batch)
    if batch >= 16:
        cap = min(cap, batch // 2)
    cap -= cap % 8
    for t in range(cap, 0, -8):
        if batch % t == 0:
            return t
    # TODO(synk): batches with no multiple-of-8 divisor fall back to a single
    # block; pad the batch upstream if that ever exceeds VMEM.
    return batch


# ------------------------------ kernel wrapper -------------------------------
def backbone_pallas(images, txt_feat, kw, *, tb=None):
    """images: (B, N, d_img); txt_feat: (B, C) f32 -> (B, d_out) f32."""
    B, N, d_img = images.shape
    c = kw["w_img"].shape[1]
    d_out = kw["w_out"].shape[1]

    vmem_budget = _vmem_budget_bytes()
    if tb is None:
        tb = _choose_tb(B, _tb_target(N, d_img, images.dtype.itemsize, vmem_budget))
    assert B % tb == 0, (B, tb)
    grid = B // tb

    # Free row-major metadata reshape (no transpose => no HBM pass).
    imgs_flat = images.reshape(B * N, d_img)

    # Constant segment-mean matrix: row i has 1/N in columns [i*N, (i+1)*N).
    seg = (jnp.kron(jnp.eye(tb, dtype=jnp.float32),
                    jnp.ones((1, N), jnp.float32)) * (1.0 / N)).astype(jnp.bfloat16)

    const2 = lambda b: (0, 0)
    cost = pl.CostEstimate(
        flops=(2 * B * N * d_img * c            # image projection
               + 2 * B * (tb * N) * c           # segment-mean matmul
               + 2 * B * (2 * c) * c            # gate
               + 2 * B * c * d_out),            # output projection
        transcendentals=B * c,                  # sigmoid
        bytes_accessed=(imgs_flat.size * imgs_flat.dtype.itemsize
                        + txt_feat.size * 4 + B * d_out * 4
                        + 2 * (kw["w_img"].size + kw["wg_img"].size
                               + kw["wg_txt"].size + kw["w_out"].size)),
    )

    return pl.pallas_call(
        _backbone_kernel,
        out_shape=jax.ShapeDtypeStruct((B, d_out), jnp.float32),
        grid=(grid,),
        in_specs=[
            pl.BlockSpec((tb * N, d_img), lambda b: (b, 0)),   # flattened images
            pl.BlockSpec((tb, c), lambda b: (b, 0)),           # text features
            pl.BlockSpec((tb, tb * N), const2),                # segment-mean matrix
            pl.BlockSpec((d_img, c), const2),                  # w_img (bf16)
            pl.BlockSpec((1, c), const2),                      # b_img
            pl.BlockSpec((c, c), const2),                      # w_gate img half
            pl.BlockSpec((c, c), const2),                      # w_gate txt half
            pl.BlockSpec((1, c), const2),                      # b_gate
            pl.BlockSpec((c, d_out), const2),                  # w_out
            pl.BlockSpec((1, d_out), const2),                  # b_out
        ],
        out_specs=pl.BlockSpec((tb, d_out), lambda b: (b, 0)),
        compiler_params=pltpu.CompilerParams(
            dimension_semantics=("parallel",),
            vmem_limit_bytes=vmem_budget),
        cost_estimate=cost,
    )(imgs_flat, txt_feat, seg,
      kw["w_img"], kw["b_img"], kw["wg_img"], kw["wg_txt"], kw["b_gate"],
      kw["w_out"], kw["b_out"])


# ------------------------------- glue (JAX) ----------------------------------
def embed_text(text_ids, emb_table):
    """text_ids: (B, L) int32 -> mean-pooled word embeddings (B, txt_dim)."""
    # TODO(synk): mean-pools over all L positions; padding-token handling of the
    # original text encoder is unknown.
    emb = jnp.take(emb_table, text_ids, axis=0)       # (B, L, txt_dim) gather
    return jnp.mean(emb, axis=1)


def text_features(text_ids, params):
    """Tiny (txt_dim=32 < 128 lanes) projection kept in XLA to stay lane-dense."""
    pooled = embed_text(text_ids, params["word_embedding"])              # (B, txt_dim)
    return jnp.maximum(pooled @ params["w_txt"] + params["b_txt"], 0.0)  # (B, C)


def _prep_kernel_weights(params):
    """bf16 weight casts done once per forward (weights are tiny vs. images)."""
    c = params["w_img"].shape[1]
    return {
        "w_img": params["w_img"].astype(jnp.bfloat16),
        "b_img": params["b_img"].astype(jnp.float32),
        "wg_img": params["w_gate"][:c].astype(jnp.bfloat16),   # concat order: [img, txt]
        "wg_txt": params["w_gate"][c:].astype(jnp.bfloat16),
        "b_gate": params["b_gate"].astype(jnp.float32),
        "w_out": params["w_out"].astype(jnp.bfloat16),
        "b_out": params["b_out"].astype(jnp.float32),
    }


@jax.jit
def trimsyn_forward(query_text, pos_text, neg_text,
                    query_imgs, pos_imgs, neg_imgs, params):
    # Three pallas_calls with shared resident weights: avoids the full
    # read+write HBM pass a q/p/n image concat would cost; the dominant image
    # stream goes through HBM exactly once per branch.
    kw = _prep_kernel_weights(params)

    def branch(text, imgs):
        return backbone_pallas(imgs, text_features(text, params), kw)

    return (branch(query_text, query_imgs),
            branch(pos_text, pos_imgs),
            branch(neg_text, neg_imgs))


def backbone_reference(text_ids, images, params):
    """Pure-JAX f32 reference of one backbone branch (for validation)."""
    txt_feat = text_features(text_ids, params)
    proj = jnp.maximum(
        jnp.einsum("bnd,dc->bnc", images, params["w_img"]) + params["b_img"], 0.0)
    img_feat = jnp.mean(proj, axis=1)
    gate = jax.nn.sigmoid(
        jnp.concatenate([img_feat, txt_feat], axis=-1) @ params["w_gate"]
        + params["b_gate"])
    fused = gate * img_feat + (1.0 - gate) * txt_feat
    return fused @ params["w_out"] + params["b_out"]


def init_params(key, *, txt_vocab_size, txt_dim, img_dim, compact_dim, output_dim):
    ks = jax.random.split(key, 6)
    scale = 0.02
    return {
        "word_embedding": scale * jax.random.normal(ks[0], (txt_vocab_size, txt_dim), jnp.float32),
        "w_img": scale * jax.random.normal(ks[1], (img_dim, compact_dim), jnp.float32),
        "b_img": jnp.zeros((1, compact_dim), jnp.float32),
        "w_txt": scale * jax.random.normal(ks[2], (txt_dim, compact_dim), jnp.float32),
        "b_txt": jnp.zeros((1, compact_dim), jnp.float32),
        "w_gate": scale * jax.random.normal(ks[3], (2 * compact_dim, compact_dim), jnp.float32),
        "b_gate": jnp.zeros((1, compact_dim), jnp.float32),
        "w_out": scale * jax.random.normal(ks[4], (compact_dim, output_dim), jnp.float32),
        "b_out": jnp.zeros((1, output_dim), jnp.float32),
    }


if __name__ == "__main__":
    # Small shapes consistent with the module's docstring conventions:
    #   text: B x L token ids   (orig B x 100)
    #   images: B x N x img_dim (orig B x 50 x 2048)
    B, L, N = 2, 8, 8
    txt_vocab_size, txt_dim = 64, 32
    img_dim, compact_dim, output_dim = 128, 128, 128

    key = jax.random.PRNGKey(0)
    k_par, k_qt, k_pt, k_nt, k_qi, k_pi, k_ni = jax.random.split(key, 7)

    params = init_params(k_par, txt_vocab_size=txt_vocab_size, txt_dim=txt_dim,
                         img_dim=img_dim, compact_dim=compact_dim,
                         output_dim=output_dim)

    query_text = jax.random.randint(k_qt, (B, L), 0, txt_vocab_size, jnp.int32)
    pos_text = jax.random.randint(k_pt, (B, L), 0, txt_vocab_size, jnp.int32)
    neg_text = jax.random.randint(k_nt, (B, L), 0, txt_vocab_size, jnp.int32)
    query_imgs = jax.random.normal(k_qi, (B, N, img_dim), jnp.float32)
    pos_imgs = jax.random.normal(k_pi, (B, N, img_dim), jnp.float32)
    neg_imgs = jax.random.normal(k_ni, (B, N, img_dim), jnp.float32)

    q, p, n = trimsyn_forward(query_text, pos_text, neg_text,
                              query_imgs, pos_imgs, neg_imgs, params)
    jax.block_until_ready((q, p, n))

    assert q.shape == (B, output_dim) and p.shape == (B, output_dim) and n.shape == (B, output_dim)
    assert jnp.all(jnp.isfinite(q)) and jnp.all(jnp.isfinite(p)) and jnp.all(jnp.isfinite(n))

    # Loose check against a pure-JAX f32 reference (kernel uses bf16 MXU inputs).
    q_ref = backbone_reference(query_text, query_imgs, params)
    assert jnp.allclose(q, q_ref, atol=5e-2, rtol=5e-2), float(jnp.max(jnp.abs(q - q_ref)))

    print("KERNEL_OK")
</pallas_src>

<mosaic_0001>
module attributes {stable_mosaic.version = 11 : i64} {
  func.func @_backbone_kernel(%arg0: i32, %arg1: memref<16x128xf32, #tpu.memory_space<vmem>>, %arg2: memref<2x128xf32, #tpu.memory_space<vmem>>, %arg3: memref<2x16xbf16, #tpu.memory_space<vmem>>, %arg4: memref<128x128xbf16, #tpu.memory_space<vmem>>, %arg5: memref<1x128xf32, #tpu.memory_space<vmem>>, %arg6: memref<128x128xbf16, #tpu.memory_space<vmem>>, %arg7: memref<128x128xbf16, #tpu.memory_space<vmem>>, %arg8: memref<1x128xf32, #tpu.memory_space<vmem>>, %arg9: memref<128x128xbf16, #tpu.memory_space<vmem>>, %arg10: memref<1x128xf32, #tpu.memory_space<vmem>>, %arg11: memref<2x128xf32, #tpu.memory_space<vmem>>) attributes {dimension_semantics = [#tpu.dimension_semantics<parallel>], iteration_bounds = array<i64: 1>, scalar_prefetch = 0 : i64, scratch_operands = 0 : i64, tpu.core_type = #tpu.core_type<tc>, window_params = [{transform_indices = @transform_0, window_bounds = array<i64: 16, 128>}, {transform_indices = @transform_1, window_bounds = array<i64: 2, 128>}, {pipeline_mode = #tpu.pipeline_mode<synchronous>, transform_indices = @transform_2, window_bounds = array<i64: 2, 16>}, {pipeline_mode = #tpu.pipeline_mode<synchronous>, transform_indices = @transform_3, window_bounds = array<i64: 128, 128>}, {pipeline_mode = #tpu.pipeline_mode<synchronous>, transform_indices = @transform_4, window_bounds = array<i64: 1, 128>}, {pipeline_mode = #tpu.pipeline_mode<synchronous>, transform_indices = @transform_5, window_bounds = array<i64: 128, 128>}, {pipeline_mode = #tpu.pipeline_mode<synchronous>, transform_indices = @transform_6, window_bounds = array<i64: 128, 128>}, {pipeline_mode = #tpu.pipeline_mode<synchronous>, transform_indices = @transform_7, window_bounds = array<i64: 1, 128>}, {pipeline_mode = #tpu.pipeline_mode<synchronous>, transform_indices = @transform_8, window_bounds = array<i64: 128, 128>}, {pipeline_mode = #tpu.pipeline_mode<synchronous>, transform_indices = @transform_9, window_bounds = array<i64: 1, 128>}, {transform_indices = @transform_10, window_bounds = array<i64: 2, 128>}]} {
    %c0 = arith.constant 0 : index
    %c0_0 = arith.constant 0 : index
    %0 = vector.load %arg1[%c0, %c0_0] : memref<16x128xf32, #tpu.memory_space<vmem>>, vector<16x128xf32>
    %1 = arith.truncf %0 : vector<16x128xf32> to vector<16x128xbf16>
    %c0_1 = arith.constant 0 : index
    %c0_2 = arith.constant 0 : index
    %2 = vector.load %arg4[%c0_1, %c0_2] : memref<128x128xbf16, #tpu.memory_space<vmem>>, vector<128x128xbf16>
    %cst = arith.constant dense<0.000000e+00> : vector<16x128xf32>
    %3 = tpu.matmul %1, %2, %cst {dimension_numbers = #tpu.dot_dimension_numbers<[1], [0], [0], [1], [0, 0, 1, 1], [], []>} : vector<16x128xbf16>, vector<128x128xbf16>, vector<16x128xf32> -> vector<16x128xf32>
    %c0_3 = arith.constant 0 : index
    %c0_4 = arith.constant 0 : index
    %4 = vector.load %arg5[%c0_3, %c0_4] : memref<1x128xf32, #tpu.memory_space<vmem>>, vector<1x128xf32>
    %5 = vector.broadcast %4 : vector<1x128xf32> to vector<16x128xf32>
    %6 = arith.addf %3, %5 : vector<16x128xf32>
    %cst_5 = arith.constant 0.000000e+00 : f32
    %7 = vector.broadcast %cst_5 : f32 to vector<16x128xf32>
    %8 = arith.maximumf %6, %7 : vector<16x128xf32>
    %c0_6 = arith.constant 0 : index
    %c0_7 = arith.constant 0 : index
    %9 = vector.load %arg3[%c0_6, %c0_7] : memref<2x16xbf16, #tpu.memory_space<vmem>>, vector<2x16xbf16>
    %10 = arith.truncf %8 : vector<16x128xf32> to vector<16x128xbf16>
    %cst_8 = arith.constant dense<0.000000e+00> : vector<2x128xf32>
    %11 = tpu.matmul %9, %10, %cst_8 {dimension_numbers = #tpu.dot_dimension_numbers<[1], [0], [0], [1], [0, 0, 1, 1], [], []>} : vector<2x16xbf16>, vector<16x128xbf16>, vector<2x128xf32> -> vector<2x128xf32>
    %c0_9 = arith.constant 0 : index
    %c0_10 = arith.constant 0 : index
    %12 = vector.load %arg2[%c0_9, %c0_10] : memref<2x128xf32, #tpu.memory_space<vmem>>, vector<2x128xf32>
    %13 = arith.truncf %11 : vector<2x128xf32> to vector<2x128xbf16>
    %c0_11 = arith.constant 0 : index
    %c0_12 = arith.constant 0 : index
    %14 = vector.load %arg6[%c0_11, %c0_12] : memref<128x128xbf16, #tpu.memory_space<vmem>>, vector<128x128xbf16>
    %cst_13 = arith.constant dense<0.000000e+00> : vector<2x128xf32>
    %15 = tpu.matmul %13, %14, %cst_13 {dimension_numbers = #tpu.dot_dimension_numbers<[1], [0], [0], [1], [0, 0, 1, 1], [], []>} : vector<2x128xbf16>, vector<128x128xbf16>, vector<2x128xf32> -> vector<2x128xf32>
    %16 = arith.truncf %12 : vector<2x128xf32> to vector<2x128xbf16>
    %c0_14 = arith.constant 0 : index
    %c0_15 = arith.constant 0 : index
    %17 = vector.load %arg7[%c0_14, %c0_15] : memref<128x128xbf16, #tpu.memory_space<vmem>>, vector<128x128xbf16>
    %cst_16 = arith.constant dense<0.000000e+00> : vector<2x128xf32>
    %18 = tpu.matmul %16, %17, %cst_16 {dimension_numbers = #tpu.dot_dimension_numbers<[1], [0], [0], [1], [0, 0, 1, 1], [], []>} : vector<2x128xbf16>, vector<128x128xbf16>, vector<2x128xf32> -> vector<2x128xf32>
    %19 = arith.addf %15, %18 : vector<2x128xf32>
    %c0_17 = arith.constant 0 : index
    %c0_18 = arith.constant 0 : index
    %20 = vector.load %arg8[%c0_17, %c0_18] : memref<1x128xf32, #tpu.memory_space<vmem>>, vector<1x128xf32>
    %21 = vector.broadcast %20 : vector<1x128xf32> to vector<2x128xf32>
    %22 = arith.addf %19, %21 : vector<2x128xf32>
    %23 = arith.negf %22 : vector<2x128xf32>
    %24 = math.exp %23 : vector<2x128xf32>
    %cst_19 = arith.constant 1.000000e+00 : f32
    %25 = vector.broadcast %cst_19 : f32 to vector<2x128xf32>
    %26 = arith.addf %25, %24 : vector<2x128xf32>
    %27 = arith.divf %25, %26 : vector<2x128xf32>
    %28 = arith.mulf %27, %11 : vector<2x128xf32>
    %cst_20 = arith.constant 1.000000e+00 : f32
    %29 = vector.broadcast %cst_20 : f32 to vector<2x128xf32>
    %30 = arith.subf %29, %27 : vector<2x128xf32>
    %31 = arith.mulf %30, %12 : vector<2x128xf32>
    %32 = arith.addf %28, %31 : vector<2x128xf32>
    %33 = arith.truncf %32 : vector<2x128xf32> to vector<2x128xbf16>
    %c0_21 = arith.constant 0 : index
    %c0_22 = arith.constant 0 : index
    %34 = vector.load %arg9[%c0_21, %c0_22] : memref<128x128xbf16, #tpu.memory_space<vmem>>, vector<128x128xbf16>
    %cst_23 = arith.constant dense<0.000000e+00> : vector<2x128xf32>
    %35 = tpu.matmul %33, %34, %cst_23 {dimension_numbers = #tpu.dot_dimension_numbers<[1], [0], [0], [1], [0, 0, 1, 1], [], []>} : vector<2x128xbf16>, vector<128x128xbf16>, vector<2x128xf32> -> vector<2x128xf32>
    %c0_24 = arith.constant 0 : index
    %c0_25 = arith.constant 0 : index
    %36 = vector.load %arg10[%c0_24, %c0_25] : memref<1x128xf32, #tpu.memory_space<vmem>>, vector<1x128xf32>
    %37 = vector.broadcast %36 : vector<1x128xf32> to vector<2x128xf32>
    %38 = arith.addf %35, %37 : vector<2x128xf32>
    %c0_26 = arith.constant 0 : index
    %c0_27 = arith.constant 0 : index
    %39 = vector.load %arg11[%c0_26, %c0_27] : memref<2x128xf32, #tpu.memory_space<vmem>>, vector<2x128xf32>
    tpu.vector_store %arg11[%c0_26, %c0_27], %38 {strides = array<i32>} : memref<2x128xf32, #tpu.memory_space<vmem>>, vector<2x128xf32>,
    return
  }
  func.func @transform_0(%arg0: i32) -> (i32, i32) {
    %c0_i32 = arith.constant 0 : i32
    %c0_i32_0 = arith.constant 0 : i32
    return %arg0, %c0_i32 : i32, i32
  }
  func.func @transform_1(%arg0: i32) -> (i32, i32) {
    %c0_i32 = arith.constant 0 : i32
    %c0_i32_0 = arith.constant 0 : i32
    return %arg0, %c0_i32 : i32, i32
  }
  func.func @transform_2(%arg0: i32) -> (i32, i32) {
    %c0_i32 = arith.constant 0 : i32
    %c0_i32_0 = arith.constant 0 : i32
    %c0_i32_1 = arith.constant 0 : i32
    return %c0_i32, %c0_i32_0 : i32, i32
  }
  func.func @transform_3(%arg0: i32) -> (i32, i32) {
    %c0_i32 = arith.constant 0 : i32
    %c0_i32_0 = arith.constant 0 : i32
    %c0_i32_1 = arith.constant 0 : i32
    return %c0_i32, %c0_i32_0 : i32, i32
  }
  func.func @transform_4(%arg0: i32) -> (i32, i32) {
    %c0_i32 = arith.constant 0 : i32
    %c0_i32_0 = arith.constant 0 : i32
    %c0_i32_1 = arith.constant 0 : i32
    return %c0_i32, %c0_i32_0 : i32, i32
  }
  func.func @transform_5(%arg0: i32) -> (i32, i32) {
    %c0_i32 = arith.constant 0 : i32
    %c0_i32_0 = arith.constant 0 : i32
    %c0_i32_1 = arith.constant 0 : i32
    return %c0_i32, %c0_i32_0 : i32, i32
  }
  func.func @transform_6(%arg0: i32) -> (i32, i32) {
    %c0_i32 = arith.constant 0 : i32
    %c0_i32_0 = arith.constant 0 : i32
    %c0_i32_1 = arith.constant 0 : i32
    return %c0_i32, %c0_i32_0 : i32, i32
  }
  func.func @transform_7(%arg0: i32) -> (i32, i32) {
    %c0_i32 = arith.constant 0 : i32
    %c0_i32_0 = arith.constant 0 : i32
    %c0_i32_1 = arith.constant 0 : i32
    return %c0_i32, %c0_i32_0 : i32, i32
  }
  func.func @transform_8(%arg0: i32) -> (i32, i32) {
    %c0_i32 = arith.constant 0 : i32
    %c0_i32_0 = arith.constant 0 : i32
    %c0_i32_1 = arith.constant 0 : i32
    return %c0_i32, %c0_i32_0 : i32, i32
  }
  func.func @transform_9(%arg0: i32) -> (i32, i32) {
    %c0_i32 = arith.constant 0 : i32
    %c0_i32_0 = arith.constant 0 : i32
    %c0_i32_1 = arith.constant 0 : i32
    return %c0_i32, %c0_i32_0 : i32, i32
  }
  func.func @transform_10(%arg0: i32) -> (i32, i32) {
    %c0_i32 = arith.constant 0 : i32
    %c0_i32_0 = arith.constant 0 : i32
    return %arg0, %c0_i32 : i32, i32
  }
}

</mosaic_0001>

<llo_original>
// kernel: trimsyn_forward.5
$region0: #{trimsyn_forward.5}
  #allocation0 [shape = 'u32[]', space=smem, size = 0x4, offset = 0x4, fixed_abs, tag = 'smem constant byte address 0x4 - core index']
  #allocation1 [shape = 'u32[144,128]{1,0:T(1,128)}', space=vmem, size = 0x12000, scoped, tag = 'internal scratch']
  %s0 = inlined_call_operand.vmem [shape: f32[16,128], index: 0, kind: input, shape index: {}]
  %s1 = inlined_call_operand.vmem [shape: f32[2,128], index: 1, kind: input, shape index: {}]
  %s2 = inlined_call_operand.vmem [shape: bf16[2,16], index: 2, kind: input, shape index: {}]
  %s3 = inlined_call_operand.vmem [shape: bf16[128,128], index: 3, kind: input, shape index: {}]
  %s4 = inlined_call_operand.vmem [shape: f32[1,128], index: 4, kind: input, shape index: {}]
  %s5 = inlined_call_operand.vmem [shape: bf16[128,128], index: 5, kind: input, shape index: {}]
  %s6 = inlined_call_operand.vmem [shape: bf16[128,128], index: 6, kind: input, shape index: {}]
  %s7 = inlined_call_operand.vmem [shape: f32[1,128], index: 7, kind: input, shape index: {}]
  %s8 = inlined_call_operand.vmem [shape: bf16[128,128], index: 8, kind: input, shape index: {}]
  %s9 = inlined_call_operand.vmem [shape: f32[1,128], index: 9, kind: input, shape index: {}]
  %s10 = inlined_call_operand.hbm [shape: f32[2,128], index: 10, kind: output, shape index: {}]
  %s11 = sld [smem:[#allocation0]]
  $region50: #{trimsyn_forward.5} parent=0
    _
  %s13 = ssub.s32 1, %s11
  %s14 = scalar_select 0, %s13, %s11
  $region1: #{trimsyn_forward.5} parent=0
    #allocation2 [shape = 'u8[1024]{0}', space=vmem, size = 0x400, scoped, tag = 'output window, operand 0, single buffered']
    #allocation3 [shape = 's32[1]{0}', space=sflag, size = 0x4, scoped, tag = 'scoped memory for trimsyn_forward.5']
    %15 = vsyncpa [#allocation3], 0
    // Predicated region
    $region2: #{trimsyn_forward.5} parent=1 // pred_check
      _
    $region3: #{trimsyn_forward.5} parent=1 // pred_check_branch
      %17 = sbr.rel (0) target = $region5
    $region4: #{trimsyn_forward.5} parent=1 // pred_region
      _
    $region5: #{trimsyn_forward.5} parent=1 // pred_fallthru
      _
    // Predicated region
    $region6: #{trimsyn_forward.5} parent=1 // pred_check
      _
    $region7: #{trimsyn_forward.5} parent=1 // pred_check_branch
      %19 = sbr.rel (0) target = $region9
    $region8: #{trimsyn_forward.5} parent=1 // pred_region
      _
    $region9: #{trimsyn_forward.5} parent=1 // pred_fallthru
      _
    // Predicated region
    $region10: #{trimsyn_forward.5} parent=1 // pred_check
      _
    $region11: #{trimsyn_forward.5} parent=1 // pred_check_branch
      %21 = sbr.rel (0) target = $region13
    $region12: #{trimsyn_forward.5} parent=1 // pred_region
      _
    $region13: #{trimsyn_forward.5} parent=1 // pred_fallthru
      _
    // Predicated region
    $region14: #{trimsyn_forward.5} parent=1 // pred_check
      _
    $region15: #{trimsyn_forward.5} parent=1 // pred_check_branch
      %23 = sbr.rel (0) target = $region17
    $region16: #{trimsyn_forward.5} parent=1 // pred_region
      _
    $region17: #{trimsyn_forward.5} parent=1 // pred_fallthru
      _
    // Predicated region
    $region18: #{trimsyn_forward.5} parent=1 // pred_check
      _
    $region19: #{trimsyn_forward.5} parent=1 // pred_check_branch
      %25 = sbr.rel (0) target = $region21
    $region20: #{trimsyn_forward.5} parent=1 // pred_region
      _
    $region21: #{trimsyn_forward.5} parent=1 // pred_fallthru
      _
    // Predicated region
    $region22: #{trimsyn_forward.5} parent=1 // pred_check
      _
    $region23: #{trimsyn_forward.5} parent=1 // pred_check_branch
      %27 = sbr.rel (0) target = $region25
    $region24: #{trimsyn_forward.5} parent=1 // pred_region
      _
    $region25: #{trimsyn_forward.5} parent=1 // pred_fallthru
      _
    // Predicated region
    $region26: #{trimsyn_forward.5} parent=1 // pred_check
      _
    $region27: #{trimsyn_forward.5} parent=1 // pred_check_branch
      %29 = sbr.rel (0) target = $region29
    $region28: #{trimsyn_forward.5} parent=1 // pred_region
      _
    $region29: #{trimsyn_forward.5} parent=1 // pred_fallthru
      _
    // Predicated region
    $region30: #{trimsyn_forward.5} parent=1 // pred_check
      _
    $region31: #{trimsyn_forward.5} parent=1 // pred_check_branch
      %31 = sbr.rel (0) target = $region33
    $region32: #{trimsyn_forward.5} parent=1 // pred_region
      _
    $region33: #{trimsyn_forward.5} parent=1 // pred_fallthru
      _
    // Predicated region
    $region34: #{trimsyn_forward.5} parent=1 // pred_check
      _
    $region35: #{trimsyn_forward.5} parent=1 // pred_check_branch
      %33 = sbr.rel (0) target = $region37
    $region36: #{trimsyn_forward.5} parent=1 // pred_region
      _
    $region37: #{trimsyn_forward.5} parent=1 // pred_fallthru
      _
    // Predicated region
    $region38: #{trimsyn_forward.5} parent=1 // pred_check
      _
    $region39: #{trimsyn_forward.5} parent=1 // pred_check_branch
      %35 = sbr.rel (0) target = $region41
    $region40: #{trimsyn_forward.5} parent=1 // pred_region
      _
    $region41: #{trimsyn_forward.5} parent=1 // pred_fallthru
      _
    %v37 = vld [vmem:[%s0] sm:$0xff]
    %v38 = vld [vmem:[%s0 + $0x8] sm:$0xff]
    %v39 = vpack.c.bf16 %v38, %v37
    %v40 = vld [vmem:[%s3] sm:$0xf]
    %v41 = vld [vmem:[%s3 + $0x4] sm:$0xf]
    %v42 = vld [vmem:[%s3 + $0x8] sm:$0xf]
    %v43 = vld [vmem:[%s3 + $0xc] sm:$0xf]
    %v44 = vld [vmem:[%s3 + $0x10] sm:$0xf]
    %v45 = vld [vmem:[%s3 + $0x14] sm:$0xf]
    %v46 = vld [vmem:[%s3 + $0x18] sm:$0xf]
    %v47 = vld [vmem:[%s3 + $0x1c] sm:$0xf]
    %v48 = vld [vmem:[%s3 + $0x20] sm:$0xf]
    %v49 = vld [vmem:[%s3 + $0x24] sm:$0xf]
    %v50 = vld [vmem:[%s3 + $0x28] sm:$0xf]
    %v51 = vld [vmem:[%s3 + $0x2c] sm:$0xf]
    %v52 = vld [vmem:[%s3 + $0x30] sm:$0xf]
    %v53 = vld [vmem:[%s3 + $0x34] sm:$0xf]
    %v54 = vld [vmem:[%s3 + $0x38] sm:$0xf]
    %v55 = vld [vmem:[%s3 + $0x3c] sm:$0xf]
    %v56 = vld [vmem:[%s4] sm:$0x1]
    %v58 = vlaneseq
    %v59 = vshrl.u32 %v58, 7
    %v60 = vsub.s32 0, %v59
    %v61 = vrot.slane %v56, %v60
    %v79 = vunpack.c.l.b16 %v40
    %v80 = vunpack.c.l.b16 %v41
    %v81 = vunpack.c.l.b16 %v42
    %v82 = vunpack.c.l.b16 %v43
    %v83 = vunpack.c.l.b16 %v44
    %v84 = vunpack.c.l.b16 %v45
    %v85 = vunpack.c.l.b16 %v46
    %v86 = vunpack.c.l.b16 %v47
    %v87 = vunpack.c.l.b16 %v48
    %v88 = vunpack.c.l.b16 %v49
    %v89 = vunpack.c.l.b16 %v50
    %v90 = vunpack.c.l.b16 %v51
    %v91 = vunpack.c.l.b16 %v52
    %v92 = vunpack.c.l.b16 %v53
    %v93 = vunpack.c.l.b16 %v54
    %v94 = vunpack.c.l.b16 %v55
    %v95 = vpack.c.b16 %v80, %v79
    %v96 = vpack.c.b16 %v82, %v81
    %v97 = vpack.c.b16 %v84, %v83
    %v98 = vpack.c.b16 %v86, %v85
    %v99 = vpack.c.b16 %v88, %v87
    %v100 = vpack.c.b16 %v90, %v89
    %v101 = vpack.c.b16 %v92, %v91
    %v102 = vpack.c.b16 %v94, %v93
    %111 = vmatprep.subr.bf16.mxu0 0
    %112 = vmatpush1.bf16.msra.mxu0 %v102
    %113 = vmatprep.subr.bf16.mxu0 0
    %114 = vmatpush1.bf16.msra.mxu0 %v101
    %115 = vmatprep.subr.bf16.mxu0 0
    %116 = vmatpush1.bf16.msra.mxu0 %v100
    %117 = vmatprep.subr.bf16.mxu0 0
    %118 = vmatpush1.bf16.msra.mxu0 %v99
    %119 = vmatprep.subr.bf16.mxu0 0
    %120 = vmatpush1.bf16.msra.mxu0 %v98
    %121 = vmatprep.subr.bf16.mxu0 0
    %122 = vmatpush1.bf16.msra.mxu0 %v97
    %123 = vmatprep.subr.bf16.mxu0 0
    %124 = vmatpush1.bf16.msra.mxu0 %v96
    %125 = vmatprep.subr.bf16.mxu0 0
    %126 = vmatpush1.bf16.msra.mxu0 %v95
    %127 = vmatprep.subr.bf16.mxu0 0
    %128 = vmatpush2.bf16.msra.mxu0 0
    %129 = vmatprep.subr.bf16.mxu0 0
    %130 = vmatpush2.bf16.msra.mxu0 0
    %131 = vmatprep.subr.bf16.mxu0 0
    %132 = vmatpush2.bf16.msra.mxu0 0
    %133 = vmatprep.subr.bf16.mxu0 0
    %134 = vmatpush2.bf16.msra.mxu0 0
    %135 = vmatprep.subr.bf16.mxu0 0
    %136 = vmatpush2.bf16.msra.mxu0 0
    %137 = vmatprep.subr.bf16.mxu0 0
    %138 = vmatpush2.bf16.msra.mxu0 0
    %139 = vmatprep.subr.bf16.mxu0 0
    %140 = vmatpush2.bf16.msra.mxu0 0
    %141 = vmatprep.subr.bf16.mxu0 0
    %142 = vmatpush2.bf16.msra.mxu0 0
    %143 = vmatprep.mubr.bf16.mxu0 0
    %144 = vmatmul.mubr.bf16.gmra.mxu0 %v39
    %v145 = vpop.f32.mrf.mxu0
    %v146 = vadd.f32 %v61, %v145
    %v147 = vpop.f32.mrf.mxu0
    %v148 = vpop.f32.mrf.mxu0
    %v149 = vadd.f32 %v61, %v148
    %v150 = vpop.f32.mrf.mxu0
    %151 = vdwg.mxu0
    %v152 = vmax.f32 %v146, 0.0
    %v153 = vmax.f32 %v149, 0.0
    %v154 = vld [vmem:[%s2] sm:$0x1]
    %v155 = vpack.c.bf16 %v153, %v152
    %vm156 = vcmask 130048
    %v158 = vsel %vm156, %v154, 0
    %160 = vmatprep.subr.bf16.mxu0 0
    %161 = vmatpush1.bf16.msra.mxu0 0
    %162 = vmatprep.subr.bf16.mxu0 0
    %163 = vmatpush1.bf16.msra.mxu0 0
    %164 = vmatprep.subr.bf16.mxu0 0
    %165 = vmatpush1.bf16.msra.mxu0 0
    %166 = vmatprep.subr.bf16.mxu0 0
    %167 = vmatpush1.bf16.msra.mxu0 0
    %168 = vmatprep.subr.bf16.mxu0 0
    %169 = vmatpush1.bf16.msra.mxu0 0
    %170 = vmatprep.subr.bf16.mxu0 0
    %171 = vmatpush1.bf16.msra.mxu0 0
    %172 = vmatprep.subr.bf16.mxu0 0
    %173 = vmatpush1.bf16.msra.mxu0 0
    %174 = vmatprep.subr.bf16.mxu0 0
    %175 = vmatpush1.bf16.msra.mxu0 %v155
    %176 = vmatprep.subr.bf16.mxu0 0
    %177 = vmatpush2.bf16.msra.mxu0 0
    %178 = vmatprep.subr.bf16.mxu0 0
    %179 = vmatpush2.bf16.msra.mxu0 0
    %180 = vmatprep.subr.bf16.mxu0 0
    %181 = vmatpush2.bf16.msra.mxu0 0
    %182 = vmatprep.subr.bf16.mxu0 0
    %183 = vmatpush2.bf16.msra.mxu0 0
    %184 = vmatprep.subr.bf16.mxu0 0
    %185 = vmatpush2.bf16.msra.mxu0 0
    %186 = vmatprep.subr.bf16.mxu0 0
    %187 = vmatpush2.bf16.msra.mxu0 0
    %188 = vmatprep.subr.bf16.mxu0 0
    %189 = vmatpush2.bf16.msra.mxu0 0
    %190 = vmatprep.subr.bf16.mxu0 0
    %191 = vmatpush2.bf16.msra.mxu0 0
    %192 = vmatprep.mubr.bf16.mxu0 0
    %193 = vmatmul.mubr.bf16.gmra.mxu0 %v158
    %v194 = vpop.f32.mrf.mxu0
    %v195 = vadd.f32 0.0, %v194
    %v196 = vpop.f32.mrf.mxu0
    %v197 = vpop.f32.mrf.mxu0
    %v198 = vpop.f32.mrf.mxu0
    %199 = vdwg.mxu0
    %v200 = vld [vmem:[%s1] sm:$0x3]
    %v201 = vpack.c.bf16 %v195, %v195
    %v202 = vld [vmem:[%s5] sm:$0xf]
    %v203 = vld [vmem:[%s5 + $0x4] sm:$0xf]
    %v204 = vld [vmem:[%s5 + $0x8] sm:$0xf]
    %v205 = vld [vmem:[%s5 + $0xc] sm:$0xf]
    %v206 = vld [vmem:[%s5 + $0x10] sm:$0xf]
    %v207 = vld [vmem:[%s5 + $0x14] sm:$0xf]
    %v208 = vld [vmem:[%s5 + $0x18] sm:$0xf]
    %v209 = vld [vmem:[%s5 + $0x1c] sm:$0xf]
    %v210 = vld [vmem:[%s5 + $0x20] sm:$0xf]
    %v211 = vld [vmem:[%s5 + $0x24] sm:$0xf]
    %v212 = vld [vmem:[%s5 + $0x28] sm:$0xf]
    %v213 = vld [vmem:[%s5 + $0x2c] sm:$0xf]
    %v214 = vld [vmem:[%s5 + $0x30] sm:$0xf]
    %v215 = vld [vmem:[%s5 + $0x34] sm:$0xf]
    %v216 = vld [vmem:[%s5 + $0x38] sm:$0xf]
    %v217 = vld [vmem:[%s5 + $0x3c] sm:$0xf]
    %v218 = vpack.c.bf16 %v200, %v200
    %v219 = vld [vmem:[%s6] sm:$0xf]
    %v220 = vld [vmem:[%s6 + $0x4] sm:$0xf]
    %v221 = vld [vmem:[%s6 + $0x8] sm:$0xf]
    %v222 = vld [vmem:[%s6 + $0xc] sm:$0xf]
    %v223 = vld [vmem:[%s6 + $0x10] sm:$0xf]
    %v224 = vld [vmem:[%s6 + $0x14] sm:$0xf]
    %v225 = vld [vmem:[%s6 + $0x18] sm:$0xf]
    %v226 = vld [vmem:[%s6 + $0x1c] sm:$0xf]
    %v227 = vld [vmem:[%s6 + $0x20] sm:$0xf]
    %v228 = vld [vmem:[%s6 + $0x24] sm:$0xf]
    %v229 = vld [vmem:[%s6 + $0x28] sm:$0xf]
    %v230 = vld [vmem:[%s6 + $0x2c] sm:$0xf]
    %v231 = vld [vmem:[%s6 + $0x30] sm:$0xf]
    %v232 = vld [vmem:[%s6 + $0x34] sm:$0xf]
    %v233 = vld [vmem:[%s6 + $0x38] sm:$0xf]
    %v234 = vld [vmem:[%s6 + $0x3c] sm:$0xf]
    %v251 = vunpack.c.l.b16 %v219
    %v252 = vunpack.c.l.b16 %v220
    %v253 = vunpack.c.l.b16 %v221
    %v254 = vunpack.c.l.b16 %v222
    %v255 = vunpack.c.l.b16 %v223
    %v256 = vunpack.c.l.b16 %v224
    %v257 = vunpack.c.l.b16 %v225
    %v258 = vunpack.c.l.b16 %v226
    %v259 = vunpack.c.l.b16 %v227
    %v260 = vunpack.c.l.b16 %v228
    %v261 = vunpack.c.l.b16 %v229
    %v262 = vunpack.c.l.b16 %v230
    %v263 = vunpack.c.l.b16 %v231
    %v264 = vunpack.c.l.b16 %v232
    %v265 = vunpack.c.l.b16 %v233
    %v266 = vunpack.c.l.b16 %v234
    %v267 = vpack.c.b16 %v252, %v251
    %v268 = vpack.c.b16 %v254, %v253
    %v269 = vpack.c.b16 %v256, %v255
    %v270 = vpack.c.b16 %v258, %v257
    %v271 = vpack.c.b16 %v260, %v259
    %v272 = vpack.c.b16 %v262, %v261
    %v273 = vpack.c.b16 %v264, %v263
    %v274 = vpack.c.b16 %v266, %v265
    %283 = vmatprep.subr.bf16.mxu0 0
    %284 = vmatpush1.bf16.msra.mxu0 %v274
    %285 = vmatprep.subr.bf16.mxu0 0
    %286 = vmatpush1.bf16.msra.mxu0 %v273
    %287 = vmatprep.subr.bf16.mxu0 0
    %288 = vmatpush1.bf16.msra.mxu0 %v272
    %289 = vmatprep.subr.bf16.mxu0 0
    %290 = vmatpush1.bf16.msra.mxu0 %v271
    %291 = vmatprep.subr.bf16.mxu0 0
    %292 = vmatpush1.bf16.msra.mxu0 %v270
    %293 = vmatprep.subr.bf16.mxu0 0
    %294 = vmatpush1.bf16.msra.mxu0 %v269
    %295 = vmatprep.subr.bf16.mxu0 0
    %296 = vmatpush1.bf16.msra.mxu0 %v268
    %297 = vmatprep.subr.bf16.mxu0 0
    %298 = vmatpush1.bf16.msra.mxu0 %v267
    %299 = vmatprep.subr.bf16.mxu0 0
    %300 = vmatpush2.bf16.msra.mxu0 0
    %301 = vmatprep.subr.bf16.mxu0 0
    %302 = vmatpush2.bf16.msra.mxu0 0
    %303 = vmatprep.subr.bf16.mxu0 0
    %304 = vmatpush2.bf16.msra.mxu0 0
    %305 = vmatprep.subr.bf16.mxu0 0
    %306 = vmatpush2.bf16.msra.mxu0 0
    %307 = vmatprep.subr.bf16.mxu0 0
    %308 = vmatpush2.bf16.msra.mxu0 0
    %309 = vmatprep.subr.bf16.mxu0 0
    %310 = vmatpush2.bf16.msra.mxu0 0
    %311 = vmatprep.subr.bf16.mxu0 0
    %312 = vmatpush2.bf16.msra.mxu0 0
    %313 = vmatprep.subr.bf16.mxu0 0
    %314 = vmatpush2.bf16.msra.mxu0 0
    %315 = vmatprep.mubr.bf16.mxu0 0
    %316 = vmatmul.mubr.bf16.gmra.mxu0 %v218
    %v317 = vpop.f32.mrf.mxu0
    %v318 = vadd.f32 0.0, %v317
    %v319 = vpop.f32.mrf.mxu0
    %v320 = vpop.f32.mrf.mxu0
    %v321 = vpop.f32.mrf.mxu0
    %322 = vdwg.mxu0
    %v339 = vunpack.c.l.b16 %v202
    %v340 = vunpack.c.l.b16 %v203
    %v341 = vunpack.c.l.b16 %v204
    %v342 = vunpack.c.l.b16 %v205
    %v343 = vunpack.c.l.b16 %v206
    %v344 = vunpack.c.l.b16 %v207
    %v345 = vunpack.c.l.b16 %v208
    %v346 = vunpack.c.l.b16 %v209
    %v347 = vunpack.c.l.b16 %v210
    %v348 = vunpack.c.l.b16 %v211
    %v349 = vunpack.c.l.b16 %v212
    %v350 = vunpack.c.l.b16 %v213
    %v351 = vunpack.c.l.b16 %v214
    %v352 = vunpack.c.l.b16 %v215
    %v353 = vunpack.c.l.b16 %v216
    %v354 = vunpack.c.l.b16 %v217
    %v355 = vpack.c.b16 %v340, %v339
    %v356 = vpack.c.b16 %v342, %v341
    %v357 = vpack.c.b16 %v344, %v343
    %v358 = vpack.c.b16 %v346, %v345
    %v359 = vpack.c.b16 %v348, %v347
    %v360 = vpack.c.b16 %v350, %v349
    %v361 = vpack.c.b16 %v352, %v351
    %v362 = vpack.c.b16 %v354, %v353
    %371 = vmatprep.subr.bf16.mxu0 0
    %372 = vmatpush1.bf16.msra.mxu0 %v362
    %373 = vmatprep.subr.bf16.mxu0 0
    %374 = vmatpush1.bf16.msra.mxu0 %v361
    %375 = vmatprep.subr.bf16.mxu0 0
    %376 = vmatpush1.bf16.msra.mxu0 %v360
    %377 = vmatprep.subr.bf16.mxu0 0
    %378 = vmatpush1.bf16.msra.mxu0 %v359
    %379 = vmatprep.subr.bf16.mxu0 0
    %380 = vmatpush1.bf16.msra.mxu0 %v358
    %381 = vmatprep.subr.bf16.mxu0 0
    %382 = vmatpush1.bf16.msra.mxu0 %v357
    %383 = vmatprep.subr.bf16.mxu0 0
    %384 = vmatpush1.bf16.msra.mxu0 %v356
    %385 = vmatprep.subr.bf16.mxu0 0
    %386 = vmatpush1.bf16.msra.mxu0 %v355
    %387 = vmatprep.subr.bf16.mxu0 0
    %388 = vmatpush2.bf16.msra.mxu0 0
    %389 = vmatprep.subr.bf16.mxu0 0
    %390 = vmatpush2.bf16.msra.mxu0 0
    %391 = vmatprep.subr.bf16.mxu0 0
    %392 = vmatpush2.bf16.msra.mxu0 0
    %393 = vmatprep.subr.bf16.mxu0 0
    %394 = vmatpush2.bf16.msra.mxu0 0
    %395 = vmatprep.subr.bf16.mxu0 0
    %396 = vmatpush2.bf16.msra.mxu0 0
    %397 = vmatprep.subr.bf16.mxu0 0
    %398 = vmatpush2.bf16.msra.mxu0 0
    %399 = vmatprep.subr.bf16.mxu0 0
    %400 = vmatpush2.bf16.msra.mxu0 0
    %401 = vmatprep.subr.bf16.mxu0 0
    %402 = vmatpush2.bf16.msra.mxu0 0
    %403 = vmatprep.mubr.bf16.mxu0 0
    %404 = vmatmul.mubr.bf16.gmra.mxu0 %v201
    %v405 = vpop.f32.mrf.mxu0
    %v406 = vadd.f32 %v318, %v405
    %v407 = vpop.f32.mrf.mxu0
    %v408 = vpop.f32.mrf.mxu0
    %v409 = vpop.f32.mrf.mxu0
    %410 = vdwg.mxu0
    %v411 = vld [vmem:[%s7] sm:$0x1]
    %v413 = vlaneseq
    %v414 = vshrl.u32 %v413, 7
    %v415 = vsub.s32 0, %v414
    %v416 = vrot.slane %v411, %v415
    %v418 = vadd.f32 %v406, %v416
    %v419 = vxor.u32 %v418, 2147483648
    %v420 = vmul.f32 %v419, 1.442695
    %v421 = vpow.pop %v420
    %v422 = vadd.f32 %v421, 1.0
    %v423 = vrcp.pop %v422
    %v424 = vmul.f32 1.0, %v423
    %v425 = vmul.f32 %v424, %v195
    %v426 = vsub.f32 1.0, %v424
    %v427 = vmul.f32 %v426, %v200
    %v428 = vadd.f32 %v425, %v427
    %v429 = vpack.c.bf16 %v428, %v428
    %v430 = vld [vmem:[%s8] sm:$0xf]
    %v431 = vld [vmem:[%s8 + $0x4] sm:$0xf]
    %v432 = vld [vmem:[%s8 + $0x8] sm:$0xf]
    %v433 = vld [vmem:[%s8 + $0xc] sm:$0xf]
    %v434 = vld [vmem:[%s8 + $0x10] sm:$0xf]
    %v435 = vld [vmem:[%s8 + $0x14] sm:$0xf]
    %v436 = vld [vmem:[%s8 + $0x18] sm:$0xf]
    %v437 = vld [vmem:[%s8 + $0x1c] sm:$0xf]
    %v438 = vld [vmem:[%s8 + $0x20] sm:$0xf]
    %v439 = vld [vmem:[%s8 + $0x24] sm:$0xf]
    %v440 = vld [vmem:[%s8 + $0x28] sm:$0xf]
    %v441 = vld [vmem:[%s8 + $0x2c] sm:$0xf]
    %v442 = vld [vmem:[%s8 + $0x30] sm:$0xf]
    %v443 = vld [vmem:[%s8 + $0x34] sm:$0xf]
    %v444 = vld [vmem:[%s8 + $0x38] sm:$0xf]
    %v445 = vld [vmem:[%s8 + $0x3c] sm:$0xf]
    %v446 = vld [vmem:[%s9] sm:$0x1]
    %v448 = vlaneseq
    %v449 = vshrl.u32 %v448, 7
    %v450 = vsub.s32 0, %v449
    %v451 = vrot.slane %v446, %v450
    %v469 = vunpack.c.l.b16 %v430
    %v470 = vunpack.c.l.b16 %v431
    %v471 = vunpack.c.l.b16 %v432
    %v472 = vunpack.c.l.b16 %v433
    %v473 = vunpack.c.l.b16 %v434
    %v474 = vunpack.c.l.b16 %v435
    %v475 = vunpack.c.l.b16 %v436
    %v476 = vunpack.c.l.b16 %v437
    %v477 = vunpack.c.l.b16 %v438
    %v478 = vunpack.c.l.b16 %v439
    %v479 = vunpack.c.l.b16 %v440
    %v480 = vunpack.c.l.b16 %v441
    %v481 = vunpack.c.l.b16 %v442
    %v482 = vunpack.c.l.b16 %v443
    %v483 = vunpack.c.l.b16 %v444
    %v484 = vunpack.c.l.b16 %v445
    %v485 = vpack.c.b16 %v470, %v469
    %v486 = vpack.c.b16 %v472, %v471
    %v487 = vpack.c.b16 %v474, %v473
    %v488 = vpack.c.b16 %v476, %v475
    %v489 = vpack.c.b16 %v478, %v477
    %v490 = vpack.c.b16 %v480, %v479
    %v491 = vpack.c.b16 %v482, %v481
    %v492 = vpack.c.b16 %v484, %v483
    %501 = vmatprep.subr.bf16.mxu0 0
    %502 = vmatpush1.bf16.msra.mxu0 %v492
    %503 = vmatprep.subr.bf16.mxu0 0
    %504 = vmatpush1.bf16.msra.mxu0 %v491
    %505 = vmatprep.subr.bf16.mxu0 0
    %506 = vmatpush1.bf16.msra.mxu0 %v490
    %507 = vmatprep.subr.bf16.mxu0 0
    %508 = vmatpush1.bf16.msra.mxu0 %v489
    %509 = vmatprep.subr.bf16.mxu0 0
    %510 = vmatpush1.bf16.msra.mxu0 %v488
    %511 = vmatprep.subr.bf16.mxu0 0
    %512 = vmatpush1.bf16.msra.mxu0 %v487
    %513 = vmatprep.subr.bf16.mxu0 0
    %514 = vmatpush1.bf16.msra.mxu0 %v486
    %515 = vmatprep.subr.bf16.mxu0 0
    %516 = vmatpush1.bf16.msra.mxu0 %v485
    %517 = vmatprep.subr.bf16.mxu0 0
    %518 = vmatpush2.bf16.msra.mxu0 0
    %519 = vmatprep.subr.bf16.mxu0 0
    %520 = vmatpush2.bf16.msra.mxu0 0
    %521 = vmatprep.subr.bf16.mxu0 0
    %522 = vmatpush2.bf16.msra.mxu0 0
    %523 = vmatprep.subr.bf16.mxu0 0
    %524 = vmatpush2.bf16.msra.mxu0 0
    %525 = vmatprep.subr.bf16.mxu0 0
    %526 = vmatpush2.bf16.msra.mxu0 0
    %527 = vmatprep.subr.bf16.mxu0 0
    %528 = vmatpush2.bf16.msra.mxu0 0
    %529 = vmatprep.subr.bf16.mxu0 0
    %530 = vmatpush2.bf16.msra.mxu0 0
    %531 = vmatprep.subr.bf16.mxu0 0
    %532 = vmatpush2.bf16.msra.mxu0 0
    %533 = vmatprep.mubr.bf16.mxu0 0
    %534 = vmatmul.mubr.bf16.gmra.mxu0 %v429
    %v535 = vpop.f32.mrf.mxu0
    %v536 = vadd.f32 %v451, %v535
    %v537 = vpop.f32.mrf.mxu0
    %v538 = vpop.f32.mrf.mxu0
    %v539 = vpop.f32.mrf.mxu0
    %540 = vdwg.mxu0
    %541 = vst [vmem:[#allocation2] sm:$0x3] %v536
    // Predicated region
    $region42: #{trimsyn_forward.5} parent=1 // pred_check
      _
    $region43: #{trimsyn_forward.5} parent=1 // pred_check_branch
      %543 = sbr.rel (0) target = $region45
    $region44: #{trimsyn_forward.5} parent=1 // pred_region
      %s545 = ssub.s32 32, 32
      %546 = vsyncadd [#allocation3], %s545
      %s548 = sshll.u32 [#allocation2], 4
      %s549 = int_to_ptr.vmem [resolvable:$true] %s548
      %551 = dma.vmem_to_hbm [thread:$0]  %s549, 32, %s10, [#allocation3]
    $region45: #{trimsyn_forward.5} parent=1 // pred_fallthru
      _
    // Predicated region
    $region46: #{trimsyn_forward.5} parent=1 // pred_check
      _
    $region47: #{trimsyn_forward.5} parent=1 // pred_check_branch
      %553 = sbr.rel (0) target = $region49
    $region48: #{trimsyn_forward.5} parent=1 // pred_region
      %554 = dma.done [#allocation3], 32
    $region49: #{trimsyn_forward.5} parent=1 // pred_fallthru
      _
    %555 = vsyncpa [#allocation3], 1

</llo_original>
